<compile_context>
chip_gen: v6e
topology: v6e:2x2x1
jax: 0.10.0
libtpu: 0.0.40
codegen_flags: <defaults>
</compile_context>

<pallas_src>
import functools

import jax
import jax.numpy as jnp
from jax.experimental import pallas as pl
from jax.experimental.pallas import tpu as pltpu

DROPOUT = 0.2
INNER_MULT = 4  # FeedForward.inner_layer_dim


def _round_up(n, m):
    return ((n + m - 1) // m) * m


def _ffn_kernel(*refs, keep_threshold, inv_keep_prob, use_dropout):
    if use_dropout:
        bits_ref, x_ref, w1_ref, b1_ref, w2_ref, b2_ref, o_ref = refs
    else:
        x_ref, w1_ref, b1_ref, w2_ref, b2_ref, o_ref = refs

    # First linear (bf16 inputs -> MXU, f32 accumulation), bias + ReLU in f32.
    h = jnp.dot(x_ref[...], w1_ref[...], preferred_element_type=jnp.float32)
    h = jnp.maximum(h + b1_ref[...], 0.0)

    # Second linear.
    y = jnp.dot(h.astype(jnp.bfloat16), w2_ref[...],
                preferred_element_type=jnp.float32)
    y = y + b2_ref[...]

    if use_dropout:
        # Inverted dropout; exact integer-domain keep test (no uint->float cast).
        keep = bits_ref[...] < jnp.uint32(keep_threshold)
        y = jnp.where(keep, y * inv_keep_prob, 0.0)

    o_ref[...] = y.astype(o_ref.dtype)


def feed_forward(x, params, *, seed=0, training=True, row_tile=256):
    """x: (B, T, H).  params: dict of w1 (H,4H), b1 (4H,), w2 (4H,H), b2 (H,)."""
    B, T, H = x.shape
    inner = params["w1"].shape[1]
    BT = B * T

    # Row tile: multiple of 8 sublanes; pad B*T up to a whole number of tiles.
    TM = min(row_tile, _round_up(BT, 8))
    BT_pad = _round_up(BT, TM)
    n_tiles = BT_pad // TM

    x2d = x.reshape(BT, H).astype(jnp.bfloat16)
    if BT_pad != BT:
        x2d = jnp.pad(x2d, ((0, BT_pad - BT), (0, 0)))

    w1 = params["w1"].astype(jnp.bfloat16)
    w2 = params["w2"].astype(jnp.bfloat16)
    b1 = params["b1"].reshape(1, inner).astype(jnp.float32)
    b2 = params["b2"].reshape(1, H).astype(jnp.float32)

    use_dropout = bool(training) and DROPOUT > 0.0
    keep_prob = 1.0 - DROPOUT
    keep_threshold = min(int(round(keep_prob * 2.0 ** 32)), 2 ** 32 - 1)

    kernel = functools.partial(
        _ffn_kernel,
        keep_threshold=keep_threshold,
        inv_keep_prob=1.0 / keep_prob,
        use_dropout=use_dropout,
    )

    row_spec = pl.BlockSpec((TM, H), lambda i: (i, 0))

    def resident(shape):
        # Weights/biases: same block every grid step -> stay VMEM resident.
        return pl.BlockSpec(shape, lambda i: (0, 0))

    # TODO(synk): for very large H (bf16 w1+w2 > ~VMEM budget, esp. v7x 64 MiB)
    # add a second "arbitrary" grid axis over the 4H inner dim with a (TM, H)
    # f32 scratch accumulator; not needed at the sizes exercised here.
    in_specs = [
        row_spec,              # x tile        (TM, H)   bf16
        resident((H, inner)),  # w1            (H, 4H)   bf16
        resident((1, inner)),  # b1            (1, 4H)   f32
        resident((inner, H)),  # w2            (4H, H)   bf16
        resident((1, H)),      # b2            (1, H)    f32
    ]
    inputs = [x2d, w1, b1, w2, b2]

    if use_dropout:
        # Fresh uint32 per output element; row tiles see disjoint bits via the
        # BlockSpec, so no per-tile reseeding is needed.
        # TODO(synk): mask comes from JAX's stateless RNG, not torch's stream
        # (inverted-dropout semantics and scaling are identical).
        key = jax.random.fold_in(jax.random.PRNGKey(seed), BT)
        bits = jax.random.bits(key, (BT_pad, H), dtype=jnp.uint32)
        in_specs = [row_spec] + in_specs
        inputs = [bits] + inputs

    flops = 4 * BT_pad * H * inner  # two matmuls, 2*M*N*K each
    bytes_accessed = (
        x2d.size * 2                      # x (bf16)
        + (w1.size + w2.size) * 2         # weights (bf16)
        + (b1.size + b2.size) * 4         # biases (f32)
        + BT_pad * H * x.dtype.itemsize   # output
        + (BT_pad * H * 4 if use_dropout else 0)  # dropout bits
    )

    out2d = pl.pallas_call(
        kernel,
        out_shape=jax.ShapeDtypeStruct((BT_pad, H), x.dtype),
        grid_spec=pltpu.PrefetchScalarGridSpec(
            num_scalar_prefetch=0,
            grid=(n_tiles,),
            in_specs=in_specs,
            out_specs=row_spec,
        ),
        compiler_params=pltpu.CompilerParams(
            dimension_semantics=("parallel",),      # megacore-shard row tiles
            vmem_limit_bytes=64 * 1024 * 1024,
        ),
        cost_estimate=pl.CostEstimate(
            flops=flops, transcendentals=0, bytes_accessed=bytes_accessed
        ),
    )(*inputs)

    return out2d[:BT].reshape(B, T, H)


def init_params(key, hidden_size):
    inner = INNER_MULT * hidden_size
    k1, k2, k3, k4 = jax.random.split(key, 4)
    # PyTorch-Linear-like uniform init bounds.
    lim1 = 1.0 / jnp.sqrt(hidden_size)
    lim2 = 1.0 / jnp.sqrt(inner)
    return {
        "w1": jax.random.uniform(k1, (hidden_size, inner), jnp.float32, -lim1, lim1),
        "b1": jax.random.uniform(k2, (inner,), jnp.float32, -lim1, lim1),
        "w2": jax.random.uniform(k3, (inner, hidden_size), jnp.float32, -lim2, lim2),
        "b2": jax.random.uniform(k4, (hidden_size,), jnp.float32, -lim2, lim2),
    }


if __name__ == "__main__":
    key = jax.random.PRNGKey(0)
    kx, kp = jax.random.split(key)

    B, T, H = 2, 8, 32
    x = jax.random.normal(kx, (B, T, H), dtype=jnp.float32)
    params = init_params(kp, H)

    # Training-mode forward (dropout active, as in PyTorch .train()).
    y = feed_forward(x, params, seed=0, training=True)
    jax.block_until_ready(y)
    assert y.shape == (B, T, H)
    assert bool(jnp.all(jnp.isfinite(y)))

    # Eval-mode forward (dropout = identity); check against a pure-JAX
    # reference using the same bf16-input / f32-accumulate matmul recipe.
    y_eval = feed_forward(x, params, training=False)
    jax.block_until_ready(y_eval)

    xb = x.reshape(-1, H).astype(jnp.bfloat16)
    h = jnp.maximum(
        jnp.dot(xb, params["w1"].astype(jnp.bfloat16),
                preferred_element_type=jnp.float32) + params["b1"], 0.0)
    ref = (jnp.dot(h.astype(jnp.bfloat16), params["w2"].astype(jnp.bfloat16),
                   preferred_element_type=jnp.float32)
           + params["b2"]).reshape(B, T, H)
    assert jnp.allclose(y_eval, ref, atol=1e-4, rtol=1e-4), "mismatch vs reference"

    print("KERNEL_OK")
</pallas_src>

<mosaic_0001>
module attributes {stable_mosaic.version = 11 : i64} {
  func.func @_ffn_kernel(%arg0: i32, %arg1: memref<16x32xi32, #tpu.memory_space<vmem>>, %arg2: memref<16x32xbf16, #tpu.memory_space<vmem>>, %arg3: memref<32x128xbf16, #tpu.memory_space<vmem>>, %arg4: memref<1x128xf32, #tpu.memory_space<vmem>>, %arg5: memref<128x32xbf16, #tpu.memory_space<vmem>>, %arg6: memref<1x32xf32, #tpu.memory_space<vmem>>, %arg7: memref<16x32xf32, #tpu.memory_space<vmem>>) attributes {dimension_semantics = [#tpu.dimension_semantics<parallel>], iteration_bounds = array<i64: 1>, scalar_prefetch = 0 : i64, scratch_operands = 0 : i64, tpu.core_type = #tpu.core_type<tc>, window_params = [{transform_indices = @transform_0, window_bounds = array<i64: 16, 32>}, {transform_indices = @transform_1, window_bounds = array<i64: 16, 32>}, {pipeline_mode = #tpu.pipeline_mode<synchronous>, transform_indices = @transform_2, window_bounds = array<i64: 32, 128>}, {pipeline_mode = #tpu.pipeline_mode<synchronous>, transform_indices = @transform_3, window_bounds = array<i64: 1, 128>}, {pipeline_mode = #tpu.pipeline_mode<synchronous>, transform_indices = @transform_4, window_bounds = array<i64: 128, 32>}, {pipeline_mode = #tpu.pipeline_mode<synchronous>, transform_indices = @transform_5, window_bounds = array<i64: 1, 32>}, {transform_indices = @transform_6, window_bounds = array<i64: 16, 32>}]} {
    %c0 = arith.constant 0 : index
    %c0_0 = arith.constant 0 : index
    %0 = vector.load %arg2[%c0, %c0_0] : memref<16x32xbf16, #tpu.memory_space<vmem>>, vector<16x32xbf16>
    %c0_1 = arith.constant 0 : index
    %c0_2 = arith.constant 0 : index
    %1 = vector.load %arg3[%c0_1, %c0_2] : memref<32x128xbf16, #tpu.memory_space<vmem>>, vector<32x128xbf16>
    %cst = arith.constant dense<0.000000e+00> : vector<16x128xf32>
    %2 = tpu.matmul %0, %1, %cst {dimension_numbers = #tpu.dot_dimension_numbers<[1], [0], [0], [1], [0, 0, 1, 1], [], []>} : vector<16x32xbf16>, vector<32x128xbf16>, vector<16x128xf32> -> vector<16x128xf32>
    %c0_3 = arith.constant 0 : index
    %c0_4 = arith.constant 0 : index
    %3 = vector.load %arg4[%c0_3, %c0_4] : memref<1x128xf32, #tpu.memory_space<vmem>>, vector<1x128xf32>
    %4 = vector.broadcast %3 : vector<1x128xf32> to vector<16x128xf32>
    %5 = arith.addf %2, %4 : vector<16x128xf32>
    %cst_5 = arith.constant 0.000000e+00 : f32
    %6 = vector.broadcast %cst_5 : f32 to vector<16x128xf32>
    %7 = arith.maximumf %5, %6 : vector<16x128xf32>
    %8 = arith.truncf %7 : vector<16x128xf32> to vector<16x128xbf16>
    %c0_6 = arith.constant 0 : index
    %c0_7 = arith.constant 0 : index
    %9 = vector.load %arg5[%c0_6, %c0_7] : memref<128x32xbf16, #tpu.memory_space<vmem>>, vector<128x32xbf16>
    %cst_8 = arith.constant dense<0.000000e+00> : vector<16x32xf32>
    %10 = tpu.matmul %8, %9, %cst_8 {dimension_numbers = #tpu.dot_dimension_numbers<[1], [0], [0], [1], [0, 0, 1, 1], [], []>} : vector<16x128xbf16>, vector<128x32xbf16>, vector<16x32xf32> -> vector<16x32xf32>
    %c0_9 = arith.constant 0 : index
    %c0_10 = arith.constant 0 : index
    %11 = vector.load %arg6[%c0_9, %c0_10] : memref<1x32xf32, #tpu.memory_space<vmem>>, vector<1x32xf32>
    %12 = vector.broadcast %11 : vector<1x32xf32> to vector<16x32xf32>
    %13 = arith.addf %10, %12 : vector<16x32xf32>
    %c0_11 = arith.constant 0 : index
    %c0_12 = arith.constant 0 : index
    %14 = vector.load %arg1[%c0_11, %c0_12] : memref<16x32xi32, #tpu.memory_space<vmem>>, vector<16x32xi32>
    %c-858993459_i32 = arith.constant -858993459 : i32
    %15 = vector.broadcast %c-858993459_i32 : i32 to vector<16x32xi32>
    %16 = arith.cmpi ult, %14, %15 : vector<16x32xi32>
    %cst_13 = arith.constant 1.250000e+00 : f32
    %17 = vector.broadcast %cst_13 : f32 to vector<16x32xf32>
    %18 = arith.mulf %13, %17 : vector<16x32xf32>
    %cst_14 = arith.constant 0.000000e+00 : f32
    %19 = vector.broadcast %cst_14 : f32 to vector<16x32xf32>
    %20 = arith.select %16, %18, %19 : vector<16x32xi1>, vector<16x32xf32>
    %c0_15 = arith.constant 0 : index
    %c0_16 = arith.constant 0 : index
    %21 = vector.load %arg7[%c0_15, %c0_16] : memref<16x32xf32, #tpu.memory_space<vmem>>, vector<16x32xf32>
    tpu.vector_store %arg7[%c0_15, %c0_16], %20 {strides = array<i32>} : memref<16x32xf32, #tpu.memory_space<vmem>>, vector<16x32xf32>,
    return
  }
  func.func @transform_0(%arg0: i32) -> (i32, i32) {
    %c0_i32 = arith.constant 0 : i32
    %c0_i32_0 = arith.constant 0 : i32
    return %arg0, %c0_i32 : i32, i32
  }
  func.func @transform_1(%arg0: i32) -> (i32, i32) {
    %c0_i32 = arith.constant 0 : i32
    %c0_i32_0 = arith.constant 0 : i32
    return %arg0, %c0_i32 : i32, i32
  }
  func.func @transform_2(%arg0: i32) -> (i32, i32) {
    %c0_i32 = arith.constant 0 : i32
    %c0_i32_0 = arith.constant 0 : i32
    %c0_i32_1 = arith.constant 0 : i32
    return %c0_i32, %c0_i32_0 : i32, i32
  }
  func.func @transform_3(%arg0: i32) -> (i32, i32) {
    %c0_i32 = arith.constant 0 : i32
    %c0_i32_0 = arith.constant 0 : i32
    %c0_i32_1 = arith.constant 0 : i32
    return %c0_i32, %c0_i32_0 : i32, i32
  }
  func.func @transform_4(%arg0: i32) -> (i32, i32) {
    %c0_i32 = arith.constant 0 : i32
    %c0_i32_0 = arith.constant 0 : i32
    %c0_i32_1 = arith.constant 0 : i32
    return %c0_i32, %c0_i32_0 : i32, i32
  }
  func.func @transform_5(%arg0: i32) -> (i32, i32) {
    %c0_i32 = arith.constant 0 : i32
    %c0_i32_0 = arith.constant 0 : i32
    %c0_i32_1 = arith.constant 0 : i32
    return %c0_i32, %c0_i32_0 : i32, i32
  }
  func.func @transform_6(%arg0: i32) -> (i32, i32) {
    %c0_i32 = arith.constant 0 : i32
    %c0_i32_0 = arith.constant 0 : i32
    return %arg0, %c0_i32 : i32, i32
  }
}

</mosaic_0001>

<llo_original>
// kernel: tpu_custom_call.1
$region0: #{tpu_custom_call.1}
  #allocation0 [shape = 'u32[]', space=smem, size = 0x4, offset = 0x4, fixed_abs, tag = 'smem constant byte address 0x4 - core index']
  #allocation1 [shape = 'u32[144,128]{1,0:T(1,128)}', space=vmem, size = 0x12000, scoped, tag = 'internal scratch']
  %s0 = inlined_call_operand.vmem [shape: u32[16,32], index: 0, kind: input, shape index: {}]
  %s1 = inlined_call_operand.vmem [shape: bf16[16,32], index: 1, kind: input, shape index: {}]
  %s2 = inlined_call_operand.vmem [shape: bf16[32,128], index: 2, kind: input, shape index: {}]
  %s3 = inlined_call_operand.vmem [shape: f32[1,128], index: 3, kind: input, shape index: {}]
  %s4 = inlined_call_operand.vmem [shape: bf16[128,32], index: 4, kind: input, shape index: {}]
  %s5 = inlined_call_operand.vmem [shape: f32[1,32], index: 5, kind: input, shape index: {}]
  %s6 = inlined_call_operand.hbm [shape: f32[16,32], index: 6, kind: output, shape index: {}]
  %s7 = sld [smem:[#allocation0]]
  $region34: #{tpu_custom_call.1} parent=0
    _
  %s9 = ssub.s32 1, %s7
  %s10 = scalar_select 0, %s9, %s7
  $region1: #{tpu_custom_call.1} parent=0
    #allocation2 [shape = 'u8[8192]{0}', space=vmem, size = 0x2000, scoped, tag = 'output window, operand 0, single buffered']
    #allocation3 [shape = 's32[1]{0}', space=sflag, size = 0x4, scoped, tag = 'scoped memory for tpu_custom_call.1']
    %11 = vsyncpa [#allocation3], 0
    // Predicated region
    $region2: #{tpu_custom_call.1} parent=1 // pred_check
      _
    $region3: #{tpu_custom_call.1} parent=1 // pred_check_branch
      %13 = sbr.rel (0) target = $region5
    $region4: #{tpu_custom_call.1} parent=1 // pred_region
      _
    $region5: #{tpu_custom_call.1} parent=1 // pred_fallthru
      _
    // Predicated region
    $region6: #{tpu_custom_call.1} parent=1 // pred_check
      _
    $region7: #{tpu_custom_call.1} parent=1 // pred_check_branch
      %15 = sbr.rel (0) target = $region9
    $region8: #{tpu_custom_call.1} parent=1 // pred_region
      _
    $region9: #{tpu_custom_call.1} parent=1 // pred_fallthru
      _
    // Predicated region
    $region10: #{tpu_custom_call.1} parent=1 // pred_check
      _
    $region11: #{tpu_custom_call.1} parent=1 // pred_check_branch
      %17 = sbr.rel (0) target = $region13
    $region12: #{tpu_custom_call.1} parent=1 // pred_region
      _
    $region13: #{tpu_custom_call.1} parent=1 // pred_fallthru
      _
    // Predicated region
    $region14: #{tpu_custom_call.1} parent=1 // pred_check
      _
    $region15: #{tpu_custom_call.1} parent=1 // pred_check_branch
      %19 = sbr.rel (0) target = $region17
    $region16: #{tpu_custom_call.1} parent=1 // pred_region
      _
    $region17: #{tpu_custom_call.1} parent=1 // pred_fallthru
      _
    // Predicated region
    $region18: #{tpu_custom_call.1} parent=1 // pred_check
      _
    $region19: #{tpu_custom_call.1} parent=1 // pred_check_branch
      %21 = sbr.rel (0) target = $region21
    $region20: #{tpu_custom_call.1} parent=1 // pred_region
      _
    $region21: #{tpu_custom_call.1} parent=1 // pred_fallthru
      _
    // Predicated region
    $region22: #{tpu_custom_call.1} parent=1 // pred_check
      _
    $region23: #{tpu_custom_call.1} parent=1 // pred_check_branch
      %23 = sbr.rel (0) target = $region25
    $region24: #{tpu_custom_call.1} parent=1 // pred_region
      _
    $region25: #{tpu_custom_call.1} parent=1 // pred_fallthru
      _
    %v25 = vld [vmem:[%s1] sm:$0xf]
    %v26 = vld [vmem:[%s1 + $0x4] sm:$0xf]
    %v27 = vld [vmem:[%s2] sm:$0xf]
    %v28 = vld [vmem:[%s2 + $0x4] sm:$0xf]
    %v29 = vld [vmem:[%s2 + $0x8] sm:$0xf]
    %v30 = vld [vmem:[%s2 + $0xc] sm:$0xf]
    %v31 = vld [vmem:[%s3] sm:$0x1]
    %v33 = vlaneseq
    %v34 = vshrl.u32 %v33, 7
    %v35 = vsub.s32 0, %v34
    %v36 = vrot.slane %v31, %v35
    %v40 = vunpack.c.l.b16 %v25
    %v41 = vunpack.c.l.b16 %v26
    %v42 = vpack.c.b16 %v41, %v40
    %v47 = vunpack.c.l.b16 %v27
    %v48 = vunpack.c.l.b16 %v28
    %v49 = vunpack.c.l.b16 %v29
    %v50 = vunpack.c.l.b16 %v30
    %v51 = vpack.c.b16 %v48, %v47
    %v52 = vpack.c.b16 %v50, %v49
    %vm55 = vcmask 261120
    %v57 = vsel %vm55, %v42, 0
    %59 = vmatprep.subr.bf16.mxu0 0
    %60 = vmatpush1.bf16.msra.mxu0 0
    %61 = vmatprep.subr.bf16.mxu0 0
    %62 = vmatpush1.bf16.msra.mxu0 0
    %63 = vmatprep.subr.bf16.mxu0 0
    %64 = vmatpush1.bf16.msra.mxu0 0
    %65 = vmatprep.subr.bf16.mxu0 0
    %66 = vmatpush1.bf16.msra.mxu0 0
    %67 = vmatprep.subr.bf16.mxu0 0
    %68 = vmatpush1.bf16.msra.mxu0 0
    %69 = vmatprep.subr.bf16.mxu0 0
    %70 = vmatpush1.bf16.msra.mxu0 0
    %71 = vmatprep.subr.bf16.mxu0 0
    %72 = vmatpush1.bf16.msra.mxu0 %v52
    %73 = vmatprep.subr.bf16.mxu0 0
    %74 = vmatpush1.bf16.msra.mxu0 %v51
    %75 = vmatprep.subr.bf16.mxu0 0
    %76 = vmatpush2.bf16.msra.mxu0 0
    %77 = vmatprep.subr.bf16.mxu0 0
    %78 = vmatpush2.bf16.msra.mxu0 0
    %79 = vmatprep.subr.bf16.mxu0 0
    %80 = vmatpush2.bf16.msra.mxu0 0
    %81 = vmatprep.subr.bf16.mxu0 0
    %82 = vmatpush2.bf16.msra.mxu0 0
    %83 = vmatprep.subr.bf16.mxu0 0
    %84 = vmatpush2.bf16.msra.mxu0 0
    %85 = vmatprep.subr.bf16.mxu0 0
    %86 = vmatpush2.bf16.msra.mxu0 0
    %87 = vmatprep.subr.bf16.mxu0 0
    %88 = vmatpush2.bf16.msra.mxu0 0
    %89 = vmatprep.subr.bf16.mxu0 0
    %90 = vmatpush2.bf16.msra.mxu0 0
    %91 = vmatprep.mubr.bf16.mxu0 0
    %92 = vmatmul.mubr.bf16.gmra.mxu0 %v57
    %v93 = vpop.f32.mrf.mxu0
    %v94 = vadd.f32 %v36, %v93
    %v95 = vpop.f32.mrf.mxu0
    %v96 = vpop.f32.mrf.mxu0
    %v97 = vadd.f32 %v36, %v96
    %v98 = vpop.f32.mrf.mxu0
    %99 = vdwg.mxu0
    %v100 = vmax.f32 %v94, 0.0
    %v101 = vmax.f32 %v97, 0.0
    %v102 = vpack.c.bf16 %v101, %v100
    %v103 = vld [vmem:[%s4] sm:$0xf]
    %v104 = vld [vmem:[%s4 + $0x4] sm:$0xf]
    %v105 = vld [vmem:[%s4 + $0x8] sm:$0xf]
    %v106 = vld [vmem:[%s4 + $0xc] sm:$0xf]
    %v107 = vld [vmem:[%s4 + $0x10] sm:$0xf]
    %v108 = vld [vmem:[%s4 + $0x14] sm:$0xf]
    %v109 = vld [vmem:[%s4 + $0x18] sm:$0xf]
    %v110 = vld [vmem:[%s4 + $0x1c] sm:$0xf]
    %v111 = vld [vmem:[%s4 + $0x20] sm:$0xf]
    %v112 = vld [vmem:[%s4 + $0x24] sm:$0xf]
    %v113 = vld [vmem:[%s4 + $0x28] sm:$0xf]
    %v114 = vld [vmem:[%s4 + $0x2c] sm:$0xf]
    %v115 = vld [vmem:[%s4 + $0x30] sm:$0xf]
    %v116 = vld [vmem:[%s4 + $0x34] sm:$0xf]
    %v117 = vld [vmem:[%s4 + $0x38] sm:$0xf]
    %v118 = vld [vmem:[%s4 + $0x3c] sm:$0xf]
    %v119 = vld [vmem:[%s5] sm:$0x1]
    %v121 = vlaneseq
    %v122 = vshrl.u32 %v121, 7
    %v123 = vsub.s32 0, %v122
    %v124 = vrot.slane %v119, %v123
    %v142 = vunpack.c.l.b16 %v103
    %v143 = vunpack.c.l.b16 %v104
    %v144 = vunpack.c.l.b16 %v105
    %v145 = vunpack.c.l.b16 %v106
    %v146 = vunpack.c.l.b16 %v107
    %v147 = vunpack.c.l.b16 %v108
    %v148 = vunpack.c.l.b16 %v109
    %v149 = vunpack.c.l.b16 %v110
    %v150 = vunpack.c.l.b16 %v111
    %v151 = vunpack.c.l.b16 %v112
    %v152 = vunpack.c.l.b16 %v113
    %v153 = vunpack.c.l.b16 %v114
    %v154 = vunpack.c.l.b16 %v115
    %v155 = vunpack.c.l.b16 %v116
    %v156 = vunpack.c.l.b16 %v117
    %v157 = vunpack.c.l.b16 %v118
    %v158 = vpack.c.b16 %v143, %v142
    %v159 = vpack.c.b16 %v145, %v144
    %v160 = vpack.c.b16 %v147, %v146
    %v161 = vpack.c.b16 %v149, %v148
    %v162 = vpack.c.b16 %v151, %v150
    %v163 = vpack.c.b16 %v153, %v152
    %v164 = vpack.c.b16 %v155, %v154
    %v165 = vpack.c.b16 %v157, %v156
    %174 = vmatprep.subr.bf16.mxu0 0
    %175 = vmatpush1.bf16.msra.mxu0 %v165
    %176 = vmatprep.subr.bf16.mxu0 0
    %177 = vmatpush1.bf16.msra.mxu0 %v164
    %178 = vmatprep.subr.bf16.mxu0 0
    %179 = vmatpush1.bf16.msra.mxu0 %v163
    %180 = vmatprep.subr.bf16.mxu0 0
    %181 = vmatpush1.bf16.msra.mxu0 %v162
    %182 = vmatprep.subr.bf16.mxu0 0
    %183 = vmatpush1.bf16.msra.mxu0 %v161
    %184 = vmatprep.subr.bf16.mxu0 0
    %185 = vmatpush1.bf16.msra.mxu0 %v160
    %186 = vmatprep.subr.bf16.mxu0 0
    %187 = vmatpush1.bf16.msra.mxu0 %v159
    %188 = vmatprep.subr.bf16.mxu0 0
    %189 = vmatpush1.bf16.msra.mxu0 %v158
    %190 = vmatprep.subr.bf16.mxu0 0
    %191 = vmatpush2.bf16.msra.mxu0 0
    %192 = vmatprep.subr.bf16.mxu0 0
    %193 = vmatpush2.bf16.msra.mxu0 0
    %194 = vmatprep.subr.bf16.mxu0 0
    %195 = vmatpush2.bf16.msra.mxu0 0
    %196 = vmatprep.subr.bf16.mxu0 0
    %197 = vmatpush2.bf16.msra.mxu0 0
    %198 = vmatprep.subr.bf16.mxu0 0
    %199 = vmatpush2.bf16.msra.mxu0 0
    %200 = vmatprep.subr.bf16.mxu0 0
    %201 = vmatpush2.bf16.msra.mxu0 0
    %202 = vmatprep.subr.bf16.mxu0 0
    %203 = vmatpush2.bf16.msra.mxu0 0
    %204 = vmatprep.subr.bf16.mxu0 0
    %205 = vmatpush2.bf16.msra.mxu0 0
    %206 = vmatprep.mubr.bf16.mxu0 0
    %207 = vmatmul.mubr.bf16.gmra.mxu0 %v102
    %v208 = vpop.f32.mrf.mxu0
    %v209 = vadd.f32 %v124, %v208
    %v210 = vpop.f32.mrf.mxu0
    %v211 = vpop.f32.mrf.mxu0
    %v212 = vadd.f32 %v124, %v211
    %v213 = vpop.f32.mrf.mxu0
    %214 = vdwg.mxu0
    %v215 = vld [vmem:[%s0] sm:$0xff]
    %v216 = vld [vmem:[%s0 + $0x8] sm:$0xff]
    %vm217 = vcmp.lt.u32.totalorder %v215, 3435973837
    %vm218 = vcmp.lt.u32.totalorder %v216, 3435973837
    %v219 = vmul.f32 %v209, 1.25
    %v220 = vmul.f32 %v212, 1.25
    %v221 = vsel %vm217, %v219, 0.0
    %v222 = vsel %vm218, %v220, 0.0
    %223 = vst.msk [vmem:[#allocation2] sm:$0xff] %vm55, %v221
    %224 = vst.msk [vmem:[#allocation2 + $0x8] sm:$0xff] %vm55, %v222
    // Predicated region
    $region26: #{tpu_custom_call.1} parent=1 // pred_check
      _
    $region27: #{tpu_custom_call.1} parent=1 // pred_check_branch
      %226 = sbr.rel (0) target = $region29
    $region28: #{tpu_custom_call.1} parent=1 // pred_region
      %s228 = ssub.s32 256, 256
      %229 = vsyncadd [#allocation3], %s228
      %s230 = sshll.u32 [#allocation2], 4
      %s231 = int_to_ptr.vmem [resolvable:$true] %s230
      %236 = dma.vmem_to_hbm [thread:$0]  %s231, 256, %s6, [#allocation3], 128, 128, 8
    $region29: #{tpu_custom_call.1} parent=1 // pred_fallthru
      _
    // Predicated region
    $region30: #{tpu_custom_call.1} parent=1 // pred_check
      _
    $region31: #{tpu_custom_call.1} parent=1 // pred_check_branch
      %238 = sbr.rel (0) target = $region33
    $region32: #{tpu_custom_call.1} parent=1 // pred_region
      %239 = dma.done [#allocation3], 256
    $region33: #{tpu_custom_call.1} parent=1 // pred_fallthru
      _
    %240 = vsyncpa [#allocation3], 1

</llo_original>
